<compile_context>
chip_gen: v6e
topology: v6e:2x2x1
jax: 0.10.0
libtpu: 0.0.40
codegen_flags: <defaults>
</compile_context>

<pallas_src>
import functools
import math

import jax
import jax.numpy as jnp
from jax.experimental import pallas as pl
from jax.experimental.pallas import tpu as pltpu


_INV_SQRT2 = 0.7071067811865476


def _erf_approx(z):
    # Abramowitz & Stegun 7.1.26 rational approximation, |err| <= ~1.5e-7
    # (plus ~2e-4 relative from the approximate EUP reciprocal).
    a1, a2, a3, a4, a5 = (0.254829592, -0.284496736, 1.421413741,
                          -1.453152027, 1.061405429)
    p = 0.3275911
    az = jnp.abs(z)
    t = pl.reciprocal(1.0 + p * az, approx=True)     # EUP, frees VALU slots
    poly = ((((a5 * t + a4) * t + a3) * t + a2) * t + a1) * t
    e = 1.0 - poly * jnp.exp(-az * az)               # exp also on the EUP
    return jnp.where(z < 0, -e, e)


def _gelu_exact(x):
    # Matches torch.nn.functional.gelu (default erf-based form).
    return 0.5 * x * (1.0 + _erf_approx(x * _INV_SQRT2))


def _mlp_kernel(x_ref, w1_ref, b1_ref, w2_ref, b2_ref, o_ref, acc_ref,
                *, n_chunks, chunk_h, mxu_dtype):
    # y = gelu(x @ W1 + b1) @ W2 + b2, with the hidden dimension processed in
    # chunks so only a (tm, chunk_h) intermediate is live at any time.
    x = x_ref[...].astype(mxu_dtype)
    acc_ref[...] = jnp.zeros_like(acc_ref)
    for c in range(n_chunks):                         # small static unroll
        lo = c * chunk_h
        w1_c = w1_ref[:, lo:lo + chunk_h]             # static, aligned slices
        b1_c = b1_ref[:, lo:lo + chunk_h]
        w2_c = w2_ref[lo:lo + chunk_h, :]
        h = jnp.dot(x, w1_c, preferred_element_type=jnp.float32)
        h = _gelu_exact(h + b1_c)
        acc_ref[...] += jnp.dot(h.astype(mxu_dtype), w2_c,
                                preferred_element_type=jnp.float32)
    o_ref[...] = (acc_ref[...] + b2_ref[...]).astype(o_ref.dtype)


def _round_up(x, m):
    return ((x + m - 1) // m) * m


def _pick_hidden_chunk(hidden):
    # 512/256 keep the v6e/v7x 256-wide MXU full; 128 suffices on v5e.
    for c in (512, 256, 128):
        if hidden % c == 0:
            return c
    return hidden


def mlp_forward(x, w1, b1, w2, b2, *, block_rows=512, mxu_dtype=jnp.bfloat16):
    """Pallas forward for MLP: linear2(gelu(linear1(x))).

    x:  (..., in_dim)
    w1: (in_dim, hidden)    b1: (hidden,)
    w2: (hidden, out_dim)   b2: (out_dim,)
    """
    in_dim = x.shape[-1]
    hidden = w1.shape[1]
    out_dim = w2.shape[1]
    lead = x.shape[:-1]

    # Lane-dense 2-D (rows, features) slab.
    x2 = x.reshape(-1, in_dim)
    m = x2.shape[0]

    # Row tile: multiple of 8 (sublane); shrink so the parallel grid has at
    # least 2 steps when possible (v7x has 2 TensorCores). Ragged last block
    # is handled by Pallas write-masking -> no wrapper pad/slice HBM copies.
    if m <= 8:
        tm = m
    else:
        tm = min(block_rows, _round_up(-(-m // 2), 8))
        tm = max(8, (tm // 8) * 8)
    grid = (pl.cdiv(m, tm),)

    chunk_h = _pick_hidden_chunk(hidden)
    n_chunks = hidden // chunk_h

    w1c = w1.astype(mxu_dtype)
    w2c = w2.astype(mxu_dtype)
    b1_2d = b1.reshape(1, hidden).astype(jnp.float32)
    b2_2d = b2.reshape(1, out_dim).astype(jnp.float32)

    kernel = functools.partial(_mlp_kernel, n_chunks=n_chunks,
                               chunk_h=chunk_h, mxu_dtype=mxu_dtype)

    # VMEM budget: single-buffered resident weights + double-buffered x / out
    # tiles + f32 accumulator + per-chunk intermediates + headroom.
    w_item = jnp.dtype(mxu_dtype).itemsize
    vmem_needed = (
        (in_dim * hidden + hidden * out_dim) * w_item
        + (hidden + out_dim) * 4
        + 2 * tm * in_dim * x.dtype.itemsize
        + 2 * tm * out_dim * x.dtype.itemsize
        + tm * out_dim * 4
        + 2 * tm * chunk_h * 4
        + (4 << 20))
    vmem_limit = int(min(max(vmem_needed, 32 << 20), 100 << 20))
    # TODO(synk): for v7x (64 MiB VMEM) with very wide layers, stream W2 along
    # a second "arbitrary" grid axis instead of keeping it fully resident.

    flops = 2 * m * (in_dim * hidden + hidden * out_dim)
    bytes_accessed = (x2.size * x2.dtype.itemsize
                      + (in_dim * hidden + hidden * out_dim) * w_item
                      + (hidden + out_dim) * 4
                      + m * out_dim * x.dtype.itemsize)
    cost = pl.CostEstimate(flops=flops, transcendentals=2 * m * hidden,
                           bytes_accessed=bytes_accessed)

    def _run(single_buffer_weights):
        if single_buffer_weights:
            def const_spec(shape):
                return pl.BlockSpec(shape, lambda i: (0,) * len(shape),
                                    pipeline_mode=pl.Buffered(buffer_count=1))
        else:
            def const_spec(shape):
                return pl.BlockSpec(shape, lambda i: (0,) * len(shape))
        return pl.pallas_call(
            kernel,
            out_shape=jax.ShapeDtypeStruct((m, out_dim), x.dtype),
            grid=grid,
            in_specs=[
                pl.BlockSpec((tm, in_dim), lambda i: (i, 0)),
                const_spec((in_dim, hidden)),    # resident
                const_spec((1, hidden)),         # resident
                const_spec((hidden, out_dim)),   # resident
                const_spec((1, out_dim)),        # resident
            ],
            out_specs=pl.BlockSpec((tm, out_dim), lambda i: (i, 0)),
            scratch_shapes=[pltpu.VMEM((tm, out_dim), jnp.float32)],
            compiler_params=pltpu.CompilerParams(
                dimension_semantics=("parallel",),
                vmem_limit_bytes=vmem_limit,
            ),
            cost_estimate=cost,
        )(x2, w1c, b1_2d, w2c, b2_2d)

    try:
        out = _run(True)
    except Exception:
        # Fallback if single-buffered resident operands (Buffered(1)) are not
        # supported by the installed Pallas version.
        out = _run(False)

    return out.reshape(*lead, out_dim)


class MLPPallas:
    """JAX/Pallas mirror of the PyTorch MLP module."""

    def __init__(self, in_dim, hidden_dim, out_dim, conv=False, pre_norm=True,
                 *, key, dtype=jnp.float32):
        # pre_norm is stored (API parity) but unused — the reference module's
        # forward() never applies a norm.
        self.pre_norm = pre_norm
        self.conv = conv
        k1, k2 = jax.random.split(key)
        # Weights stored transposed to (in, out) so the kernel computes x @ W.
        # Biases zero-initialized, matching the module's _init_weights().
        s1 = 1.0 / math.sqrt(in_dim)
        s2 = 1.0 / math.sqrt(hidden_dim)
        self.w1 = jax.random.uniform(k1, (in_dim, hidden_dim), dtype,
                                     minval=-s1, maxval=s1)
        self.b1 = jnp.zeros((hidden_dim,), dtype)
        self.w2 = jax.random.uniform(k2, (hidden_dim, out_dim), dtype,
                                     minval=-s2, maxval=s2)
        self.b2 = jnp.zeros((out_dim,), dtype)

    def __call__(self, x):
        if self.conv:
            # Conv1d(kernel_size=1) on (B, C, L) == per-position matmul over
            # the channel dim.
            # TODO(synk): fuse the (B,C,L)<->(B,L,C) transposes into the
            # kernel (dot_general over the channel axis) to avoid two extra
            # HBM passes on the activations.
            xt = jnp.swapaxes(x, -1, -2)
            y = mlp_forward(xt, self.w1, self.b1, self.w2, self.b2)
            return jnp.swapaxes(y, -1, -2)
        return mlp_forward(x, self.w1, self.b1, self.w2, self.b2)


if __name__ == "__main__":
    key = jax.random.PRNGKey(0)
    kp, kx = jax.random.split(key)

    batch, seq, in_dim, hidden_dim, out_dim = 2, 8, 32, 64, 32
    mlp = MLPPallas(in_dim, hidden_dim, out_dim, conv=False, key=kp)

    x = jax.random.normal(kx, (batch, seq, in_dim), dtype=jnp.float32)
    y = jax.block_until_ready(mlp(x))

    # Pure-JAX reference with matched bf16-MXU numerics and exact erf GELU
    # (torch.nn.functional.gelu default).
    xb = x.reshape(-1, in_dim).astype(jnp.bfloat16)
    w1b = mlp.w1.astype(jnp.bfloat16)
    w2b = mlp.w2.astype(jnp.bfloat16)
    h = jnp.dot(xb, w1b, preferred_element_type=jnp.float32) + mlp.b1
    h = 0.5 * h * (1.0 + jax.lax.erf(h * (1.0 / math.sqrt(2.0))))
    y_ref = jnp.dot(h.astype(jnp.bfloat16), w2b,
                    preferred_element_type=jnp.float32) + mlp.b2
    y_ref = y_ref.reshape(batch, seq, out_dim).astype(x.dtype)

    assert y.shape == (batch, seq, out_dim) and y.dtype == x.dtype
    err = float(jnp.max(jnp.abs(y - y_ref)))
    assert jnp.allclose(y, y_ref, atol=1e-2, rtol=1e-2), f"max |err| = {err}"
    print("KERNEL_OK")
</pallas_src>

<mosaic_0001>
module attributes {stable_mosaic.version = 11 : i64} {
  func.func @_mlp_kernel(%arg0: i32, %arg1: memref<8x32xf32, #tpu.memory_space<vmem>>, %arg2: memref<32x64xbf16, #tpu.memory_space<vmem>>, %arg3: memref<1x64xf32, #tpu.memory_space<vmem>>, %arg4: memref<64x32xbf16, #tpu.memory_space<vmem>>, %arg5: memref<1x32xf32, #tpu.memory_space<vmem>>, %arg6: memref<8x32xf32, #tpu.memory_space<vmem>>, %arg7: memref<8x32xf32, #tpu.memory_space<vmem>>) attributes {dimension_semantics = [#tpu.dimension_semantics<parallel>], iteration_bounds = array<i64: 2>, scalar_prefetch = 0 : i64, scratch_operands = 1 : i64, tpu.core_type = #tpu.core_type<tc>, window_params = [{transform_indices = @transform_0, window_bounds = array<i64: 8, 32>}, {pipeline_mode = #tpu.pipeline_mode<synchronous>, transform_indices = @transform_1, window_bounds = array<i64: 32, 64>}, {pipeline_mode = #tpu.pipeline_mode<synchronous>, transform_indices = @transform_2, window_bounds = array<i64: 1, 64>}, {pipeline_mode = #tpu.pipeline_mode<synchronous>, transform_indices = @transform_3, window_bounds = array<i64: 64, 32>}, {pipeline_mode = #tpu.pipeline_mode<synchronous>, transform_indices = @transform_4, window_bounds = array<i64: 1, 32>}, {transform_indices = @transform_5, window_bounds = array<i64: 8, 32>}]} {
    %c0 = arith.constant 0 : index
    %c0_0 = arith.constant 0 : index
    %0 = vector.load %arg1[%c0, %c0_0] : memref<8x32xf32, #tpu.memory_space<vmem>>, vector<8x32xf32>
    %1 = arith.truncf %0 : vector<8x32xf32> to vector<8x32xbf16>
    %cst = arith.constant 0.000000e+00 : f32
    %2 = vector.broadcast %cst : f32 to vector<8x32xf32>
    %c0_1 = arith.constant 0 : index
    %c0_2 = arith.constant 0 : index
    %3 = vector.load %arg7[%c0_1, %c0_2] : memref<8x32xf32, #tpu.memory_space<vmem>>, vector<8x32xf32>
    tpu.vector_store %arg7[%c0_1, %c0_2], %2 {strides = array<i32>} : memref<8x32xf32, #tpu.memory_space<vmem>>, vector<8x32xf32>,
    %c0_3 = arith.constant 0 : index
    %c0_4 = arith.constant 0 : index
    %4 = vector.load %arg2[%c0_3, %c0_4] : memref<32x64xbf16, #tpu.memory_space<vmem>>, vector<32x64xbf16>
    %c0_5 = arith.constant 0 : index
    %c0_6 = arith.constant 0 : index
    %5 = vector.load %arg3[%c0_5, %c0_6] : memref<1x64xf32, #tpu.memory_space<vmem>>, vector<1x64xf32>
    %c0_7 = arith.constant 0 : index
    %c0_8 = arith.constant 0 : index
    %6 = vector.load %arg4[%c0_7, %c0_8] : memref<64x32xbf16, #tpu.memory_space<vmem>>, vector<64x32xbf16>
    %cst_9 = arith.constant dense<0.000000e+00> : vector<8x64xf32>
    %7 = tpu.matmul %1, %4, %cst_9 {dimension_numbers = #tpu.dot_dimension_numbers<[1], [0], [0], [1], [0, 0, 1, 1], [], []>} : vector<8x32xbf16>, vector<32x64xbf16>, vector<8x64xf32> -> vector<8x64xf32>
    %8 = vector.broadcast %5 : vector<1x64xf32> to vector<8x64xf32>
    %9 = arith.addf %7, %8 : vector<8x64xf32>
    %cst_10 = arith.constant 5.000000e-01 : f32
    %10 = vector.broadcast %cst_10 : f32 to vector<8x64xf32>
    %11 = arith.mulf %10, %9 : vector<8x64xf32>
    %cst_11 = arith.constant 0.707106769 : f32
    %12 = vector.broadcast %cst_11 : f32 to vector<8x64xf32>
    %13 = arith.mulf %9, %12 : vector<8x64xf32>
    %14 = math.absf %13 : vector<8x64xf32>
    %cst_12 = arith.constant 0.327591091 : f32
    %15 = vector.broadcast %cst_12 : f32 to vector<8x64xf32>
    %16 = arith.mulf %15, %14 : vector<8x64xf32>
    %cst_13 = arith.constant 1.000000e+00 : f32
    %17 = vector.broadcast %cst_13 : f32 to vector<8x64xf32>
    %18 = arith.addf %17, %16 : vector<8x64xf32>
    %19 = tpu.reciprocal %18 {approx = true} : vector<8x64xf32> -> vector<8x64xf32>
    %cst_14 = arith.constant 1.06140542 : f32
    %20 = vector.broadcast %cst_14 : f32 to vector<8x64xf32>
    %21 = arith.mulf %20, %19 : vector<8x64xf32>
    %cst_15 = arith.constant -1.45315206 : f32
    %22 = vector.broadcast %cst_15 : f32 to vector<8x64xf32>
    %23 = arith.addf %21, %22 : vector<8x64xf32>
    %24 = arith.mulf %23, %19 : vector<8x64xf32>
    %cst_16 = arith.constant 1.42141378 : f32
    %25 = vector.broadcast %cst_16 : f32 to vector<8x64xf32>
    %26 = arith.addf %24, %25 : vector<8x64xf32>
    %27 = arith.mulf %26, %19 : vector<8x64xf32>
    %cst_17 = arith.constant -0.284496725 : f32
    %28 = vector.broadcast %cst_17 : f32 to vector<8x64xf32>
    %29 = arith.addf %27, %28 : vector<8x64xf32>
    %30 = arith.mulf %29, %19 : vector<8x64xf32>
    %cst_18 = arith.constant 0.254829586 : f32
    %31 = vector.broadcast %cst_18 : f32 to vector<8x64xf32>
    %32 = arith.addf %30, %31 : vector<8x64xf32>
    %33 = arith.mulf %32, %19 : vector<8x64xf32>
    %cst_19 = arith.constant 0.000000e+00 : f32
    %34 = vector.broadcast %cst_19 : f32 to vector<8x64xf32>
    %35 = arith.subf %34, %14 : vector<8x64xf32>
    %36 = arith.mulf %35, %14 : vector<8x64xf32>
    %37 = math.exp %36 : vector<8x64xf32>
    %38 = arith.mulf %33, %37 : vector<8x64xf32>
    %cst_20 = arith.constant 1.000000e+00 : f32
    %39 = vector.broadcast %cst_20 : f32 to vector<8x64xf32>
    %40 = arith.subf %39, %38 : vector<8x64xf32>
    %cst_21 = arith.constant 0.000000e+00 : f32
    %41 = vector.broadcast %cst_21 : f32 to vector<8x64xf32>
    %42 = arith.cmpf olt, %13, %41 : vector<8x64xf32>
    %cst_22 = arith.constant 0.000000e+00 : f32
    %43 = vector.broadcast %cst_22 : f32 to vector<8x64xf32>
    %44 = arith.subf %43, %40 : vector<8x64xf32>
    %45 = arith.select %42, %44, %40 : vector<8x64xi1>, vector<8x64xf32>
    %cst_23 = arith.constant 1.000000e+00 : f32
    %46 = vector.broadcast %cst_23 : f32 to vector<8x64xf32>
    %47 = arith.addf %46, %45 : vector<8x64xf32>
    %48 = arith.mulf %11, %47 : vector<8x64xf32>
    %c0_24 = arith.constant 0 : index
    %c0_25 = arith.constant 0 : index
    %49 = vector.load %arg7[%c0_24, %c0_25] : memref<8x32xf32, #tpu.memory_space<vmem>>, vector<8x32xf32>
    %50 = arith.truncf %48 : vector<8x64xf32> to vector<8x64xbf16>
    %cst_26 = arith.constant dense<0.000000e+00> : vector<8x32xf32>
    %51 = tpu.matmul %50, %6, %cst_26 {dimension_numbers = #tpu.dot_dimension_numbers<[1], [0], [0], [1], [0, 0, 1, 1], [], []>} : vector<8x64xbf16>, vector<64x32xbf16>, vector<8x32xf32> -> vector<8x32xf32>
    %52 = arith.addf %49, %51 : vector<8x32xf32>
    %c0_27 = arith.constant 0 : index
    %c0_28 = arith.constant 0 : index
    %53 = vector.load %arg7[%c0_27, %c0_28] : memref<8x32xf32, #tpu.memory_space<vmem>>, vector<8x32xf32>
    tpu.vector_store %arg7[%c0_27, %c0_28], %52 {strides = array<i32>} : memref<8x32xf32, #tpu.memory_space<vmem>>, vector<8x32xf32>,
    %c0_29 = arith.constant 0 : index
    %c0_30 = arith.constant 0 : index
    %54 = vector.load %arg7[%c0_29, %c0_30] : memref<8x32xf32, #tpu.memory_space<vmem>>, vector<8x32xf32>
    %c0_31 = arith.constant 0 : index
    %c0_32 = arith.constant 0 : index
    %55 = vector.load %arg5[%c0_31, %c0_32] : memref<1x32xf32, #tpu.memory_space<vmem>>, vector<1x32xf32>
    %56 = vector.broadcast %55 : vector<1x32xf32> to vector<8x32xf32>
    %57 = arith.addf %54, %56 : vector<8x32xf32>
    %c0_33 = arith.constant 0 : index
    %c0_34 = arith.constant 0 : index
    %58 = vector.load %arg6[%c0_33, %c0_34] : memref<8x32xf32, #tpu.memory_space<vmem>>, vector<8x32xf32>
    tpu.vector_store %arg6[%c0_33, %c0_34], %57 {strides = array<i32>} : memref<8x32xf32, #tpu.memory_space<vmem>>, vector<8x32xf32>,
    return
  }
  func.func @transform_0(%arg0: i32) -> (i32, i32) {
    %c0_i32 = arith.constant 0 : i32
    %c0_i32_0 = arith.constant 0 : i32
    return %arg0, %c0_i32 : i32, i32
  }
  func.func @transform_1(%arg0: i32) -> (i32, i32) {
    %c0_i32 = arith.constant 0 : i32
    %c0_i32_0 = arith.constant 0 : i32
    %c0_i32_1 = arith.constant 0 : i32
    return %c0_i32, %c0_i32_0 : i32, i32
  }
  func.func @transform_2(%arg0: i32) -> (i32, i32) {
    %c0_i32 = arith.constant 0 : i32
    %c0_i32_0 = arith.constant 0 : i32
    %c0_i32_1 = arith.constant 0 : i32
    return %c0_i32, %c0_i32_0 : i32, i32
  }
  func.func @transform_3(%arg0: i32) -> (i32, i32) {
    %c0_i32 = arith.constant 0 : i32
    %c0_i32_0 = arith.constant 0 : i32
    %c0_i32_1 = arith.constant 0 : i32
    return %c0_i32, %c0_i32_0 : i32, i32
  }
  func.func @transform_4(%arg0: i32) -> (i32, i32) {
    %c0_i32 = arith.constant 0 : i32
    %c0_i32_0 = arith.constant 0 : i32
    %c0_i32_1 = arith.constant 0 : i32
    return %c0_i32, %c0_i32_0 : i32, i32
  }
  func.func @transform_5(%arg0: i32) -> (i32, i32) {
    %c0_i32 = arith.constant 0 : i32
    %c0_i32_0 = arith.constant 0 : i32
    return %arg0, %c0_i32 : i32, i32
  }
}

module attributes {stable_mosaic.version = 11 : i64} {
  func.func @_mlp_kernel(%arg0: i32, %arg1: memref<8x32xf32, #tpu.memory_space<vmem>>, %arg2: memref<32x64xbf16, #tpu.memory_space<vmem>>, %arg3: memref<1x64xf32, #tpu.memory_space<vmem>>, %arg4: memref<64x32xbf16, #tpu.memory_space<vmem>>, %arg5: memref<1x32xf32, #tpu.memory_space<vmem>>, %arg6: memref<8x32xf32, #tpu.memory_space<vmem>>, %arg7: memref<8x32xf32, #tpu.memory_space<vmem>>) attributes {dimension_semantics = [#tpu.dimension_semantics<parallel>], iteration_bounds = array<i64: 2>, scalar_prefetch = 0 : i64, scratch_operands = 1 : i64, tpu.core_type = #tpu.core_type<tc>, window_params = [{transform_indices = @transform_0, window_bounds = array<i64: 8, 32>}, {pipeline_mode = #tpu.pipeline_mode<synchronous>, transform_indices = @transform_1, window_bounds = array<i64: 32, 64>}, {pipeline_mode = #tpu.pipeline_mode<synchronous>, transform_indices = @transform_2, window_bounds = array<i64: 1, 64>}, {pipeline_mode = #tpu.pipeline_mode<synchronous>, transform_indices = @transform_3, window_bounds = array<i64: 64, 32>}, {pipeline_mode = #tpu.pipeline_mode<synchronous>, transform_indices = @transform_4, window_bounds = array<i64: 1, 32>}, {transform_indices = @transform_5, window_bounds = array<i64: 8, 32>}]} {
    %c0 = arith.constant 0 : index
    %c0_0 = arith.constant 0 : index
    %0 = vector.load %arg1[%c0, %c0_0] : memref<8x32xf32, #tpu.memory_space<vmem>>, vector<8x32xf32>
    %1 = arith.truncf %0 : vector<8x32xf32> to vector<8x32xbf16>
    %cst = arith.constant 0.000000e+00 : f32
    %2 = vector.broadcast %cst : f32 to vector<8x32xf32>
    %c0_1 = arith.constant 0 : index
    %c0_2 = arith.constant 0 : index
    %3 = vector.load %arg7[%c0_1, %c0_2] : memref<8x32xf32, #tpu.memory_space<vmem>>, vector<8x32xf32>
    tpu.vector_store %arg7[%c0_1, %c0_2], %2 {strides = array<i32>} : memref<8x32xf32, #tpu.memory_space<vmem>>, vector<8x32xf32>,
    %c0_3 = arith.constant 0 : index
    %c0_4 = arith.constant 0 : index
    %4 = vector.load %arg2[%c0_3, %c0_4] : memref<32x64xbf16, #tpu.memory_space<vmem>>, vector<32x64xbf16>
    %c0_5 = arith.constant 0 : index
    %c0_6 = arith.constant 0 : index
    %5 = vector.load %arg3[%c0_5, %c0_6] : memref<1x64xf32, #tpu.memory_space<vmem>>, vector<1x64xf32>
    %c0_7 = arith.constant 0 : index
    %c0_8 = arith.constant 0 : index
    %6 = vector.load %arg4[%c0_7, %c0_8] : memref<64x32xbf16, #tpu.memory_space<vmem>>, vector<64x32xbf16>
    %cst_9 = arith.constant dense<0.000000e+00> : vector<8x64xf32>
    %7 = tpu.matmul %1, %4, %cst_9 {dimension_numbers = #tpu.dot_dimension_numbers<[1], [0], [0], [1], [0, 0, 1, 1], [], []>} : vector<8x32xbf16>, vector<32x64xbf16>, vector<8x64xf32> -> vector<8x64xf32>
    %8 = vector.broadcast %5 : vector<1x64xf32> to vector<8x64xf32>
    %9 = arith.addf %7, %8 : vector<8x64xf32>
    %cst_10 = arith.constant 5.000000e-01 : f32
    %10 = vector.broadcast %cst_10 : f32 to vector<8x64xf32>
    %11 = arith.mulf %10, %9 : vector<8x64xf32>
    %cst_11 = arith.constant 0.707106769 : f32
    %12 = vector.broadcast %cst_11 : f32 to vector<8x64xf32>
    %13 = arith.mulf %9, %12 : vector<8x64xf32>
    %14 = math.absf %13 : vector<8x64xf32>
    %cst_12 = arith.constant 0.327591091 : f32
    %15 = vector.broadcast %cst_12 : f32 to vector<8x64xf32>
    %16 = arith.mulf %15, %14 : vector<8x64xf32>
    %cst_13 = arith.constant 1.000000e+00 : f32
    %17 = vector.broadcast %cst_13 : f32 to vector<8x64xf32>
    %18 = arith.addf %17, %16 : vector<8x64xf32>
    %19 = tpu.reciprocal %18 {approx = true} : vector<8x64xf32> -> vector<8x64xf32>
    %cst_14 = arith.constant 1.06140542 : f32
    %20 = vector.broadcast %cst_14 : f32 to vector<8x64xf32>
    %21 = arith.mulf %20, %19 : vector<8x64xf32>
    %cst_15 = arith.constant -1.45315206 : f32
    %22 = vector.broadcast %cst_15 : f32 to vector<8x64xf32>
    %23 = arith.addf %21, %22 : vector<8x64xf32>
    %24 = arith.mulf %23, %19 : vector<8x64xf32>
    %cst_16 = arith.constant 1.42141378 : f32
    %25 = vector.broadcast %cst_16 : f32 to vector<8x64xf32>
    %26 = arith.addf %24, %25 : vector<8x64xf32>
    %27 = arith.mulf %26, %19 : vector<8x64xf32>
    %cst_17 = arith.constant -0.284496725 : f32
    %28 = vector.broadcast %cst_17 : f32 to vector<8x64xf32>
    %29 = arith.addf %27, %28 : vector<8x64xf32>
    %30 = arith.mulf %29, %19 : vector<8x64xf32>
    %cst_18 = arith.constant 0.254829586 : f32
    %31 = vector.broadcast %cst_18 : f32 to vector<8x64xf32>
    %32 = arith.addf %30, %31 : vector<8x64xf32>
    %33 = arith.mulf %32, %19 : vector<8x64xf32>
    %cst_19 = arith.constant 0.000000e+00 : f32
    %34 = vector.broadcast %cst_19 : f32 to vector<8x64xf32>
    %35 = arith.subf %34, %14 : vector<8x64xf32>
    %36 = arith.mulf %35, %14 : vector<8x64xf32>
    %37 = math.exp %36 : vector<8x64xf32>
    %38 = arith.mulf %33, %37 : vector<8x64xf32>
    %cst_20 = arith.constant 1.000000e+00 : f32
    %39 = vector.broadcast %cst_20 : f32 to vector<8x64xf32>
    %40 = arith.subf %39, %38 : vector<8x64xf32>
    %cst_21 = arith.constant 0.000000e+00 : f32
    %41 = vector.broadcast %cst_21 : f32 to vector<8x64xf32>
    %42 = arith.cmpf olt, %13, %41 : vector<8x64xf32>
    %cst_22 = arith.constant 0.000000e+00 : f32
    %43 = vector.broadcast %cst_22 : f32 to vector<8x64xf32>
    %44 = arith.subf %43, %40 : vector<8x64xf32>
    %45 = arith.select %42, %44, %40 : vector<8x64xi1>, vector<8x64xf32>
    %cst_23 = arith.constant 1.000000e+00 : f32
    %46 = vector.broadcast %cst_23 : f32 to vector<8x64xf32>
    %47 = arith.addf %46, %45 : vector<8x64xf32>
    %48 = arith.mulf %11, %47 : vector<8x64xf32>
    %c0_24 = arith.constant 0 : index
    %c0_25 = arith.constant 0 : index
    %49 = vector.load %arg7[%c0_24, %c0_25] : memref<8x32xf32, #tpu.memory_space<vmem>>, vector<8x32xf32>
    %50 = arith.truncf %48 : vector<8x64xf32> to vector<8x64xbf16>
    %cst_26 = arith.constant dense<0.000000e+00> : vector<8x32xf32>
    %51 = tpu.matmul %50, %6, %cst_26 {dimension_numbers = #tpu.dot_dimension_numbers<[1], [0], [0], [1], [0, 0, 1, 1], [], []>} : vector<8x64xbf16>, vector<64x32xbf16>, vector<8x32xf32> -> vector<8x32xf32>
    %52 = arith.addf %49, %51 : vector<8x32xf32>
    %c0_27 = arith.constant 0 : index
    %c0_28 = arith.constant 0 : index
    %53 = vector.load %arg7[%c0_27, %c0_28] : memref<8x32xf32, #tpu.memory_space<vmem>>, vector<8x32xf32>
    tpu.vector_store %arg7[%c0_27, %c0_28], %52 {strides = array<i32>} : memref<8x32xf32, #tpu.memory_space<vmem>>, vector<8x32xf32>,
    %c0_29 = arith.constant 0 : index
    %c0_30 = arith.constant 0 : index
    %54 = vector.load %arg7[%c0_29, %c0_30] : memref<8x32xf32, #tpu.memory_space<vmem>>, vector<8x32xf32>
    %c0_31 = arith.constant 0 : index
    %c0_32 = arith.constant 0 : index
    %55 = vector.load %arg5[%c0_31, %c0_32] : memref<1x32xf32, #tpu.memory_space<vmem>>, vector<1x32xf32>
    %56 = vector.broadcast %55 : vector<1x32xf32> to vector<8x32xf32>
    %57 = arith.addf %54, %56 : vector<8x32xf32>
    %c0_33 = arith.constant 0 : index
    %c0_34 = arith.constant 0 : index
    %58 = vector.load %arg6[%c0_33, %c0_34] : memref<8x32xf32, #tpu.memory_space<vmem>>, vector<8x32xf32>
    tpu.vector_store %arg6[%c0_33, %c0_34], %57 {strides = array<i32>} : memref<8x32xf32, #tpu.memory_space<vmem>>, vector<8x32xf32>,
    return
  }
  func.func @transform_0(%arg0: i32) -> (i32, i32) {
    %c0_i32 = arith.constant 0 : i32
    %c0_i32_0 = arith.constant 0 : i32
    return %arg0, %c0_i32 : i32, i32
  }
  func.func @transform_1(%arg0: i32) -> (i32, i32) {
    %c0_i32 = arith.constant 0 : i32
    %c0_i32_0 = arith.constant 0 : i32
    %c0_i32_1 = arith.constant 0 : i32
    return %c0_i32, %c0_i32_0 : i32, i32
  }
  func.func @transform_2(%arg0: i32) -> (i32, i32) {
    %c0_i32 = arith.constant 0 : i32
    %c0_i32_0 = arith.constant 0 : i32
    %c0_i32_1 = arith.constant 0 : i32
    return %c0_i32, %c0_i32_0 : i32, i32
  }
  func.func @transform_3(%arg0: i32) -> (i32, i32) {
    %c0_i32 = arith.constant 0 : i32
    %c0_i32_0 = arith.constant 0 : i32
    %c0_i32_1 = arith.constant 0 : i32
    return %c0_i32, %c0_i32_0 : i32, i32
  }
  func.func @transform_4(%arg0: i32) -> (i32, i32) {
    %c0_i32 = arith.constant 0 : i32
    %c0_i32_0 = arith.constant 0 : i32
    %c0_i32_1 = arith.constant 0 : i32
    return %c0_i32, %c0_i32_0 : i32, i32
  }
  func.func @transform_5(%arg0: i32) -> (i32, i32) {
    %c0_i32 = arith.constant 0 : i32
    %c0_i32_0 = arith.constant 0 : i32
    return %arg0, %c0_i32 : i32, i32
  }
}

</mosaic_0001>

<llo_original>
// kernel: tpu_custom_call.1
$region0: #{tpu_custom_call.1}
  #allocation0 [shape = 'u32[]', space=smem, size = 0x4, offset = 0x4, fixed_abs, tag = 'smem constant byte address 0x4 - core index']
  #allocation1 [shape = 'u32[144,128]{1,0:T(1,128)}', space=vmem, size = 0x12000, scoped, tag = 'internal scratch']
  #allocation2 [shape = 'f32[8,32]{1,0:T(8,128)}', space=vmem, size = 0x1000, scoped, tag = 'scratch operand']
  %s0 = inlined_call_operand.vmem [shape: f32[16,32], index: 0, kind: input, shape index: {}]
  %s1 = inlined_call_operand.vmem [shape: bf16[32,64], index: 1, kind: input, shape index: {}]
  %s2 = inlined_call_operand.vmem [shape: f32[1,64], index: 2, kind: input, shape index: {}]
  %s3 = inlined_call_operand.vmem [shape: bf16[64,32], index: 3, kind: input, shape index: {}]
  %s4 = inlined_call_operand.vmem [shape: f32[1,32], index: 4, kind: input, shape index: {}]
  %s5 = inlined_call_operand.hbm [shape: f32[16,32], index: 5, kind: output, shape index: {}]
  %s6 = sld [smem:[#allocation0]]
  $region53: #{tpu_custom_call.1} parent=0
    _
  %s8 = ssub.s32 1, %s6
  %s9 = scalar_select 0, %s8, %s6
  $region1: #{tpu_custom_call.1} parent=0
    #allocation3 [shape = 'u8[8192]{0}', space=vmem, size = 0x2000, scoped, tag = 'output window, operand 0']
    #allocation4 [shape = 's32[2]{0}', space=sflag, size = 0x8, scoped, tag = 'scoped memory for tpu_custom_call.1']
    %10 = vsyncpa [#allocation4], 0
    %s11 = scalar_lea.sflag [#allocation4], 1
    %12 = vsyncpa %s11, 0
    loop: start=0, step=1, limit=4
    $region2: #{tpu_custom_call.1} parent=1 // loop_pre_header
      _
    $region3: #{tpu_custom_call.1} parent=1 // loop_header
      %s14 = sphi 0, %s18
      %p15 = scmp.ge.s32.totalorder %s14, 4
      %s24 = sphi 0, %s26
      %s27 = sphi 0, %s24
      %s28 = sphi 0, %s27
      %s44 = sphi 0, %s28
      %s48 = sphi 0, %s48
      %s50 = sphi 0, %s48
      %s51 = sphi 0, %s50
      %s65 = sphi 0, %s51
      %s69 = sphi 0, %s69
      %s71 = sphi 0, %s69
      %s72 = sphi 0, %s71
      %s86 = sphi 0, %s72
      %s90 = sphi 0, %s90
      %s92 = sphi 0, %s90
      %s93 = sphi 0, %s92
      %s107 = sphi 0, %s93
      %s111 = sphi 0, %s111
      %s113 = sphi 0, %s111
      %s114 = sphi 0, %s113
      %s128 = sphi 0, %s114
      %s134 = sphi 0, %s136
      %s137 = sphi 0, %s134
      %s138 = sphi 0, %s137
      %s154 = sphi 0, %s138
    $region4: #{tpu_custom_call.1} parent=1 // loop_header_branch
      %17 = sbr.rel (%p15) target = $region8
    $region5: #{tpu_custom_call.1} parent=1 // loop_body
      %s19 = ssub.s32 %s14, 1
      %s20 = ssub.s32 %s14, 2
      %s21 = sadd.s32 %s14, 1
      %s22 = ssub.s32 %s14, %s21
      %p23 = scmp.eq.s32.totalorder %s22, 0
      %s25 = sadd.s32 %s24, 1
      %s26 = scalar_select %p23, %s24, %s25
      %p29 = pneg %p23
      %p30 = scmp.eq.s32.totalorder %s14, 1
      %p31 = por %p29, %p30
      %p32 = scmp.ne.s32.totalorder %s24, %s27
      %p33 = scmp.eq.s32.totalorder %s14, 0
      %p34 = por %p32, %p33
      %p35 = scmp.ne.s32.totalorder %s24, %s27
      %p36 = scmp.eq.s32.totalorder %s19, 1
      %p37 = por %p35, %p36
      %p38 = scmp.ne.s32.totalorder %s27, %s28
      %p39 = scmp.eq.s32.totalorder %s19, 0
      %p40 = por %p38, %p39
      %p41 = scmp.ne.s32.totalorder %s27, %s28
      %p42 = scmp.eq.s32.totalorder %s20, 1
      %p43 = por %p41, %p42
      %p45 = scmp.ne.s32.totalorder %s28, %s44
      %p46 = scmp.eq.s32.totalorder %s20, 0
      %p47 = por %p45, %p46
      %s49 = sadd.s32 %s48, 1
      %p52 = scmp.eq.s32.totalorder %s14, 1
      %p53 = scmp.ne.s32.totalorder %s48, %s50
      %p54 = scmp.eq.s32.totalorder %s14, 0
      %p55 = por %p53, %p54
      %p56 = scmp.ne.s32.totalorder %s48, %s50
      %p57 = scmp.eq.s32.totalorder %s19, 1
      %p58 = por %p56, %p57
      %p59 = scmp.ne.s32.totalorder %s50, %s51
      %p60 = scmp.eq.s32.totalorder %s19, 0
      %p61 = por %p59, %p60
      %p62 = scmp.ne.s32.totalorder %s50, %s51
      %p63 = scmp.eq.s32.totalorder %s20, 1
      %p64 = por %p62, %p63
      %p66 = scmp.ne.s32.totalorder %s51, %s65
      %p67 = scmp.eq.s32.totalorder %s20, 0
      %p68 = por %p66, %p67
      %s70 = sadd.s32 %s69, 1
      %p73 = scmp.eq.s32.totalorder %s14, 1
      %p74 = scmp.ne.s32.totalorder %s69, %s71
      %p75 = scmp.eq.s32.totalorder %s14, 0
      %p76 = por %p74, %p75
      %p77 = scmp.ne.s32.totalorder %s69, %s71
      %p78 = scmp.eq.s32.totalorder %s19, 1
      %p79 = por %p77, %p78
      %p80 = scmp.ne.s32.totalorder %s71, %s72
      %p81 = scmp.eq.s32.totalorder %s19, 0
      %p82 = por %p80, %p81
      %p83 = scmp.ne.s32.totalorder %s71, %s72
      %p84 = scmp.eq.s32.totalorder %s20, 1
      %p85 = por %p83, %p84
      %p87 = scmp.ne.s32.totalorder %s72, %s86
      %p88 = scmp.eq.s32.totalorder %s20, 0
      %p89 = por %p87, %p88
      %s91 = sadd.s32 %s90, 1
      %p94 = scmp.eq.s32.totalorder %s14, 1
      %p95 = scmp.ne.s32.totalorder %s90, %s92
      %p96 = scmp.eq.s32.totalorder %s14, 0
      %p97 = por %p95, %p96
      %p98 = scmp.ne.s32.totalorder %s90, %s92
      %p99 = scmp.eq.s32.totalorder %s19, 1
      %p100 = por %p98, %p99
      %p101 = scmp.ne.s32.totalorder %s92, %s93
      %p102 = scmp.eq.s32.totalorder %s19, 0
      %p103 = por %p101, %p102
      %p104 = scmp.ne.s32.totalorder %s92, %s93
      %p105 = scmp.eq.s32.totalorder %s20, 1
      %p106 = por %p104, %p105
      %p108 = scmp.ne.s32.totalorder %s93, %s107
      %p109 = scmp.eq.s32.totalorder %s20, 0
      %p110 = por %p108, %p109
      %s112 = sadd.s32 %s111, 1
      %p115 = scmp.eq.s32.totalorder %s14, 1
      %p116 = scmp.ne.s32.totalorder %s111, %s113
      %p117 = scmp.eq.s32.totalorder %s14, 0
      %p118 = por %p116, %p117
      %p119 = scmp.ne.s32.totalorder %s111, %s113
      %p120 = scmp.eq.s32.totalorder %s19, 1
      %p121 = por %p119, %p120
      %p122 = scmp.ne.s32.totalorder %s113, %s114
      %p123 = scmp.eq.s32.totalorder %s19, 0
      %p124 = por %p122, %p123
      %p125 = scmp.ne.s32.totalorder %s113, %s114
      %p126 = scmp.eq.s32.totalorder %s20, 1
      %p127 = por %p125, %p126
      %p129 = scmp.ne.s32.totalorder %s114, %s128
      %p130 = scmp.eq.s32.totalorder %s20, 0
      %p131 = por %p129, %p130
      %s132 = ssub.s32 %s14, %s21
      %p133 = scmp.eq.s32.totalorder %s132, 0
      %s135 = sadd.s32 %s134, 1
      %s136 = scalar_select %p133, %s134, %s135
      %p139 = pneg %p133
      %p140 = scmp.eq.s32.totalorder %s14, 1
      %p141 = por %p139, %p140
      %p142 = scmp.ne.s32.totalorder %s134, %s137
      %p143 = scmp.eq.s32.totalorder %s14, 0
      %p144 = por %p142, %p143
      %p145 = scmp.ne.s32.totalorder %s134, %s137
      %p146 = scmp.eq.s32.totalorder %s19, 1
      %p147 = por %p145, %p146
      %p148 = scmp.ne.s32.totalorder %s137, %s138
      %p149 = scmp.eq.s32.totalorder %s19, 0
      %p150 = por %p148, %p149
      %p151 = scmp.ne.s32.totalorder %s137, %s138
      %p152 = scmp.eq.s32.totalorder %s20, 1
      %p153 = por %p151, %p152
      %p155 = scmp.ne.s32.totalorder %s138, %s154
      %p156 = scmp.eq.s32.totalorder %s20, 0
      %p157 = por %p155, %p156
      %p158 = scmp.le.s32.totalorder 1, %s14
      %p159 = scmp.lt.s32.totalorder %s14, 3
      %p160 = pnand %p158, %p159
      %p161 = pneg %p160
      // Predicated region
      $region9: #{tpu_custom_call.1} parent=5 // pred_check
        _
      $region10: #{tpu_custom_call.1} parent=5 // pred_check_branch
        %163 = sbr.rel (%p160) target = $region12
      $region11: #{tpu_custom_call.1} parent=5 // pred_region
        %s164 = ssub.s32 %s14, 1
        // Predicated region
        $region13: #{tpu_custom_call.1} parent=11 // pred_check
          %p165 = pneg %p61
        $region14: #{tpu_custom_call.1} parent=11 // pred_check_branch
          %167 = sbr.rel (%p165) target = $region16
        $region15: #{tpu_custom_call.1} parent=11 // pred_region
          _
        $region16: #{tpu_custom_call.1} parent=11 // pred_fallthru
          _
        // Predicated region
        $region17: #{tpu_custom_call.1} parent=11 // pred_check
          %p168 = pneg %p82
        $region18: #{tpu_custom_call.1} parent=11 // pred_check_branch
          %170 = sbr.rel (%p168) target = $region20
        $region19: #{tpu_custom_call.1} parent=11 // pred_region
          _
        $region20: #{tpu_custom_call.1} parent=11 // pred_fallthru
          _
        // Predicated region
        $region21: #{tpu_custom_call.1} parent=11 // pred_check
          %p171 = pneg %p103
        $region22: #{tpu_custom_call.1} parent=11 // pred_check_branch
          %173 = sbr.rel (%p171) target = $region24
        $region23: #{tpu_custom_call.1} parent=11 // pred_region
          _
        $region24: #{tpu_custom_call.1} parent=11 // pred_fallthru
          _
        // Predicated region
        $region25: #{tpu_custom_call.1} parent=11 // pred_check
          %p174 = pneg %p124
        $region26: #{tpu_custom_call.1} parent=11 // pred_check_branch
          %176 = sbr.rel (%p174) target = $region28
        $region27: #{tpu_custom_call.1} parent=11 // pred_region
          _
        $region28: #{tpu_custom_call.1} parent=11 // pred_fallthru
          _
      $region12: #{tpu_custom_call.1} parent=5 // pred_fallthru
        _
      %p177 = scmp.lt.s32.totalorder %s14, 2
      // Predicated region
      $region29: #{tpu_custom_call.1} parent=5 // pred_check
        %p178 = pneg %p177
      $region30: #{tpu_custom_call.1} parent=5 // pred_check_branch
        %180 = sbr.rel (%p178) target = $region32
      $region31: #{tpu_custom_call.1} parent=5 // pred_region
        // Predicated region
        $region33: #{tpu_custom_call.1} parent=31 // pred_check
          %p181 = pneg %p34
        $region34: #{tpu_custom_call.1} parent=31 // pred_check_branch
          %183 = sbr.rel (%p181) target = $region36
        $region35: #{tpu_custom_call.1} parent=31 // pred_region
          %p184 = scmp.lt.s32.totalorder %s14, 1
          %s185 = scalar_select %p184, %s14, 1
          %s186 = smul.addr %s185, 8
          %s187 = scalar_lea.vmem %s0, %s186
        $region36: #{tpu_custom_call.1} parent=31 // pred_fallthru
          _
      $region32: #{tpu_custom_call.1} parent=5 // pred_fallthru
        _
      %p188 = scmp.le.s32.totalorder 1, %s14
      %p189 = scmp.lt.s32.totalorder %s14, 3
      %p190 = pnand %p188, %p189
      %p191 = pneg %p190
      // Predicated region
      $region37: #{tpu_custom_call.1} parent=5 // pred_check
        _
      $region38: #{tpu_custom_call.1} parent=5 // pred_check_branch
        %193 = sbr.rel (%p190) target = $region40
      $region39: #{tpu_custom_call.1} parent=5 // pred_region
        %s194 = ssub.s32 %s14, 1
        %p195 = scmp.lt.s32.totalorder %s19, 1
        %s196 = scalar_select %p195, %s19, 1
        %s197 = smul.addr %s196, 8
        %s198 = scalar_lea.vmem %s0, %s197
        %p199 = pneg %p40
        %p200 = pneg %p37
        %p201 = pneg %p61
        %p202 = pneg %p58
        %p203 = pneg %p82
        %p204 = pneg %p79
        %p205 = pneg %p103
        %p206 = pneg %p100
        %p207 = pneg %p124
        %p208 = pneg %p121
        %p209 = pneg %p150
        %p210 = pneg %p147
        %s211 = sand.u32 %s137, 1
        %s212 = scalar_lea.sflag [#allocation4], %s211
        %s213 = sand.u32 %s137, 1
        %s214 = smul.addr %s213, 8
        %s215 = scalar_lea.vmem [#allocation3], %s214
        %p216 = scmp.lt.s32.totalorder %s19, 1
        %s217 = scalar_select %p216, %s19, 1
        %s218 = smul.addr %s217, 8
        %s219 = scalar_lea.vmem %s0, %s218
        %v221 = vld [vmem:[%s219] sm:$0xff]
        %v222 = vpack.c.bf16 %v221, %v221
        %vm223 = vcmask 261120
        %224 = vst.msk [vmem:[#allocation2] sm:$0xff] %vm223, 0.0
        %v225 = vld [vmem:[%s1] sm:$0xf]
        %v226 = vld [vmem:[%s1 + $0x4] sm:$0xf]
        %v227 = vld [vmem:[%s1 + $0x8] sm:$0xf]
        %v228 = vld [vmem:[%s1 + $0xc] sm:$0xf]
        %v229 = vld [vmem:[%s2] sm:$0x1]
        %v230 = vld [vmem:[%s3] sm:$0xf]
        %v231 = vld [vmem:[%s3 + $0x4] sm:$0xf]
        %v232 = vld [vmem:[%s3 + $0x8] sm:$0xf]
        %v233 = vld [vmem:[%s3 + $0xc] sm:$0xf]
        %v234 = vld [vmem:[%s3 + $0x10] sm:$0xf]
        %v235 = vld [vmem:[%s3 + $0x14] sm:$0xf]
        %v236 = vld [vmem:[%s3 + $0x18] sm:$0xf]
        %v237 = vld [vmem:[%s3 + $0x1c] sm:$0xf]
        %v239 = vlaneseq
        %v240 = vshrl.u32 %v239, 7
        %v241 = vsub.s32 0, %v240
        %v242 = vrot.slane %v229, %v241
        %v248 = vunpack.c.l.b16 %v225
        %v249 = vunpack.c.l.b16 %v226
        %v250 = vunpack.c.l.b16 %v227
        %v251 = vunpack.c.l.b16 %v228
        %v252 = vpack.c.b16 %v249, %v248
        %v253 = vpack.c.b16 %v251, %v250
        %v257 = vsel %vm223, %v222, 0
        %259 = vmatprep.subr.bf16.mxu0 0
        %260 = vmatpush1.bf16.msra.mxu0 0
        %261 = vmatprep.subr.bf16.mxu0 0
        %262 = vmatpush1.bf16.msra.mxu0 0
        %263 = vmatprep.subr.bf16.mxu0 0
        %264 = vmatpush1.bf16.msra.mxu0 0
        %265 = vmatprep.subr.bf16.mxu0 0
        %266 = vmatpush1.bf16.msra.mxu0 0
        %267 = vmatprep.subr.bf16.mxu0 0
        %268 = vmatpush1.bf16.msra.mxu0 0
        %269 = vmatprep.subr.bf16.mxu0 0
        %270 = vmatpush1.bf16.msra.mxu0 0
        %271 = vmatprep.subr.bf16.mxu0 0
        %272 = vmatpush1.bf16.msra.mxu0 %v253
        %273 = vmatprep.subr.bf16.mxu0 0
        %274 = vmatpush1.bf16.msra.mxu0 %v252
        %275 = vmatprep.subr.bf16.mxu0 0
        %276 = vmatpush2.bf16.msra.mxu0 0
        %277 = vmatprep.subr.bf16.mxu0 0
        %278 = vmatpush2.bf16.msra.mxu0 0
        %279 = vmatprep.subr.bf16.mxu0 0
        %280 = vmatpush2.bf16.msra.mxu0 0
        %281 = vmatprep.subr.bf16.mxu0 0
        %282 = vmatpush2.bf16.msra.mxu0 0
        %283 = vmatprep.subr.bf16.mxu0 0
        %284 = vmatpush2.bf16.msra.mxu0 0
        %285 = vmatprep.subr.bf16.mxu0 0
        %286 = vmatpush2.bf16.msra.mxu0 0
        %287 = vmatprep.subr.bf16.mxu0 0
        %288 = vmatpush2.bf16.msra.mxu0 0
        %289 = vmatprep.subr.bf16.mxu0 0
        %290 = vmatpush2.bf16.msra.mxu0 0
        %291 = vmatprep.mubr.bf16.mxu0 0
        %292 = vmatmul.mubr.bf16.gmra.mxu0 %v257
        %v293 = vpop.f32.mrf.mxu0
        %v294 = vadd.f32 %v242, %v293
        %v295 = vpop.f32.mrf.mxu0
        %v296 = vpop.f32.mrf.mxu0
        %v297 = vpop.f32.mrf.mxu0
        %298 = vdwg.mxu0
        %v299 = vmul.f32 %v294, 0.5
        %v300 = vmul.f32 %v294, 0.70710677
        %v301 = vand.u32 2147483647, %v300
        %v302 = vmul.f32 %v301, 0.3275911
        %v303 = vadd.f32 %v302, 1.0
        %v304 = vrcp.pop %v303
        %v305 = vmul.f32 %v304, 1.0614054
        %v306 = vadd.f32 %v305, -1.4531521
        %v307 = vmul.f32 %v306, %v304
        %v308 = vadd.f32 %v307, 1.4214138
        %v309 = vmul.f32 %v308, %v304
        %v310 = vadd.f32 %v309, -0.28449672
        %v311 = vmul.f32 %v310, %v304
        %v312 = vadd.f32 %v311, 0.2548296
        %v313 = vmul.f32 %v312, %v304
        %v314 = vsub.f32 0.0, %v301
        %v315 = vmul.f32 %v314, %v301
        %v316 = vmul.f32 %v315, 1.442695
        %v317 = vpow.pop %v316
        %v318 = vmul.f32 %v313, %v317
        %v319 = vsub.f32 1.0, %v318
        %vm320 = vcmp.lt.f32.partialorder %v300, 0.0
        %v321 = vsub.f32 0.0, %v319
        %v322 = vsel %vm320, %v321, %v319
        %v323 = vadd.f32 %v322, 1.0
        %v324 = vmul.f32 %v299, %v323
        %v325 = vld [vmem:[#allocation2] sm:$0xff]
        %v326 = vpack.c.bf16 %v324, %v324
        %v335 = vunpack.c.l.b16 %v230
        %v336 = vunpack.c.l.b16 %v231
        %v337 = vunpack.c.l.b16 %v232
        %v338 = vunpack.c.l.b16 %v233
        %v339 = vunpack.c.l.b16 %v234
        %v340 = vunpack.c.l.b16 %v235
        %v341 = vunpack.c.l.b16 %v236
        %v342 = vunpack.c.l.b16 %v237
        %v343 = vpack.c.b16 %v336, %v335
        %v344 = vpack.c.b16 %v338, %v337
        %v345 = vpack.c.b16 %v340, %v339
        %v346 = vpack.c.b16 %v342, %v341
        %vm351 = vcmask 523264
        %v353 = vsel %vm351, %v326, 0
        %355 = vmatprep.subr.bf16.mxu0 0
        %356 = vmatpush1.bf16.msra.mxu0 0
        %357 = vmatprep.subr.bf16.mxu0 0
        %358 = vmatpush1.bf16.msra.mxu0 0
        %359 = vmatprep.subr.bf16.mxu0 0
        %360 = vmatpush1.bf16.msra.mxu0 0
        %361 = vmatprep.subr.bf16.mxu0 0
        %362 = vmatpush1.bf16.msra.mxu0 0
        %363 = vmatprep.subr.bf16.mxu0 0
        %364 = vmatpush1.bf16.msra.mxu0 %v346
        %365 = vmatprep.subr.bf16.mxu0 0
        %366 = vmatpush1.bf16.msra.mxu0 %v345
        %367 = vmatprep.subr.bf16.mxu0 0
        %368 = vmatpush1.bf16.msra.mxu0 %v344
        %369 = vmatprep.subr.bf16.mxu0 0
        %370 = vmatpush1.bf16.msra.mxu0 %v343
        %371 = vmatprep.subr.bf16.mxu0 0
        %372 = vmatpush2.bf16.msra.mxu0 0
        %373 = vmatprep.subr.bf16.mxu0 0
        %374 = vmatpush2.bf16.msra.mxu0 0
        %375 = vmatprep.subr.bf16.mxu0 0
        %376 = vmatpush2.bf16.msra.mxu0 0
        %377 = vmatprep.subr.bf16.mxu0 0
        %378 = vmatpush2.bf16.msra.mxu0 0
        %379 = vmatprep.subr.bf16.mxu0 0
        %380 = vmatpush2.bf16.msra.mxu0 0
        %381 = vmatprep.subr.bf16.mxu0 0
        %382 = vmatpush2.bf16.msra.mxu0 0
        %383 = vmatprep.subr.bf16.mxu0 0
        %384 = vmatpush2.bf16.msra.mxu0 0
        %385 = vmatprep.subr.bf16.mxu0 0
        %386 = vmatpush2.bf16.msra.mxu0 0
        %387 = vmatprep.mubr.bf16.mxu0 0
        %388 = vmatmul.mubr.bf16.gmra.mxu0 %v353
        %v389 = vpop.f32.mrf.mxu0
        %v390 = vadd.f32 0.0, %v389
        %v391 = vpop.f32.mrf.mxu0
        %v392 = vpop.f32.mrf.mxu0
        %v393 = vpop.f32.mrf.mxu0
        %394 = vdwg.mxu0
        %v395 = vadd.f32 %v325, %v390
        %396 = vst.msk [vmem:[#allocation2] sm:$0xff] %vm223, %v395
        %v397 = vld [vmem:[#allocation2] sm:$0xff]
        %v398 = vld [vmem:[%s4] sm:$0x1]
        %v400 = vlaneseq
        %v401 = vshrl.u32 %v400, 7
        %v402 = vsub.s32 0, %v401
        %v403 = vrot.slane %v398, %v402
        %v405 = vadd.f32 %v397, %v403
        %406 = vst.msk [vmem:[%s215] sm:$0xff] %vm223, %v405
        %s407 = sand.u32 %s137, 1
        %s408 = scalar_lea.sflag [#allocation4], %s407
        %s409 = sand.u32 %s137, 1
        %s410 = smul.addr %s409, 8
        %s411 = scalar_lea.vmem [#allocation3], %s410
        // Predicated region
        $region41: #{tpu_custom_call.1} parent=39 // pred_check
          %p412 = pneg %p147
        $region42: #{tpu_custom_call.1} parent=39 // pred_check_branch
          %414 = sbr.rel (%p412) target = $region44
        $region43: #{tpu_custom_call.1} parent=39 // pred_region
          %s416 = ssub.s32 128, 128
          %417 = vsyncadd %s408, %s416
          %s418 = smul.addr %s19, 128
          %s419 = scalar_lea.hbm %s5, %s418
          %s421 = sshll.u32 %s411, 4
          %s422 = int_to_ptr.vmem [resolvable:$true] %s421
          %424 = dma.vmem_to_hbm [thread:$0]  %s422, 128, %s419, %s408
        $region44: #{tpu_custom_call.1} parent=39 // pred_fallthru
          _
      $region40: #{tpu_custom_call.1} parent=5 // pred_fallthru
        _
      %p425 = scmp.le.s32.totalorder 2, %s14
      // Predicated region
      $region45: #{tpu_custom_call.1} parent=5 // pred_check
        %p426 = pneg %p425
      $region46: #{tpu_custom_call.1} parent=5 // pred_check_branch
        %428 = sbr.rel (%p426) target = $region48
      $region47: #{tpu_custom_call.1} parent=5 // pred_region
        %s429 = ssub.s32 %s14, 2
        // Predicated region
        $region49: #{tpu_custom_call.1} parent=47 // pred_check
          %p430 = pneg %p153
        $region50: #{tpu_custom_call.1} parent=47 // pred_check_branch
          %432 = sbr.rel (%p430) target = $region52
        $region51: #{tpu_custom_call.1} parent=47 // pred_region
          %s433 = sand.u32 %s138, 1
          %s434 = scalar_lea.sflag [#allocation4], %s433
          %s435 = sand.u32 %s138, 1
          %s436 = smul.addr %s435, 8
          %s437 = scalar_lea.vmem [#allocation3], %s436
          %438 = dma.done %s434, 128
        $region52: #{tpu_custom_call.1} parent=47 // pred_fallthru
          _
      $region48: #{tpu_custom_call.1} parent=5 // pred_fallthru
        _
    $region6: #{tpu_custom_call.1} parent=1 // loop_footer
      %s18 = sadd.s32 1, %s14
    $region7: #{tpu_custom_call.1} parent=1 // loop_footer_branch
      %13 = sbr.rel target = $region3
    $region8: #{tpu_custom_call.1} parent=1 // loop_exit
      _
    %439 = vsyncpa [#allocation4], 1
    %s440 = scalar_lea.sflag [#allocation4], 1
    %441 = vsyncpa %s440, 1

// kernel: tpu_custom_call.1
$region0: #{tpu_custom_call.1}
  #allocation0 [shape = 'u32[]', space=smem, size = 0x4, offset = 0x4, fixed_abs, tag = 'smem constant byte address 0x4 - core index']
  #allocation1 [shape = 'u32[144,128]{1,0:T(1,128)}', space=vmem, size = 0x12000, scoped, tag = 'internal scratch']
  #allocation2 [shape = 'f32[8,32]{1,0:T(8,128)}', space=vmem, size = 0x1000, scoped, tag = 'scratch operand']
  %s0 = inlined_call_operand.vmem [shape: f32[16,32], index: 0, kind: input, shape index: {}]
  %s1 = inlined_call_operand.vmem [shape: bf16[32,64], index: 1, kind: input, shape index: {}]
  %s2 = inlined_call_operand.vmem [shape: f32[1,64], index: 2, kind: input, shape index: {}]
  %s3 = inlined_call_operand.vmem [shape: bf16[64,32], index: 3, kind: input, shape index: {}]
  %s4 = inlined_call_operand.vmem [shape: f32[1,32], index: 4, kind: input, shape index: {}]
  %s5 = inlined_call_operand.hbm [shape: f32[16,32], index: 5, kind: output, shape index: {}]
  %s6 = sld [smem:[#allocation0]]
  $region53: #{tpu_custom_call.1} parent=0
    _
  %s8 = ssub.s32 1, %s6
  %s9 = scalar_select 0, %s8, %s6
  $region1: #{tpu_custom_call.1} parent=0
    #allocation3 [shape = 'u8[8192]{0}', space=vmem, size = 0x2000, scoped, tag = 'output window, operand 0']
    #allocation4 [shape = 's32[2]{0}', space=sflag, size = 0x8, scoped, tag = 'scoped memory for tpu_custom_call.1']
    %10 = vsyncpa [#allocation4], 0
    %s11 = scalar_lea.sflag [#allocation4], 1
    %12 = vsyncpa %s11, 0
    loop: start=0, step=1, limit=4
    $region2: #{tpu_custom_call.1} parent=1 // loop_pre_header
      _
    $region3: #{tpu_custom_call.1} parent=1 // loop_header
      %s14 = sphi 0, %s18
      %p15 = scmp.ge.s32.totalorder %s14, 4
      %s24 = sphi 0, %s26
      %s27 = sphi 0, %s24
      %s28 = sphi 0, %s27
      %s44 = sphi 0, %s28
      %s48 = sphi 0, %s48
      %s50 = sphi 0, %s48
      %s51 = sphi 0, %s50
      %s65 = sphi 0, %s51
      %s69 = sphi 0, %s69
      %s71 = sphi 0, %s69
      %s72 = sphi 0, %s71
      %s86 = sphi 0, %s72
      %s90 = sphi 0, %s90
      %s92 = sphi 0, %s90
      %s93 = sphi 0, %s92
      %s107 = sphi 0, %s93
      %s111 = sphi 0, %s111
      %s113 = sphi 0, %s111
      %s114 = sphi 0, %s113
      %s128 = sphi 0, %s114
      %s134 = sphi 0, %s136
      %s137 = sphi 0, %s134
      %s138 = sphi 0, %s137
      %s154 = sphi 0, %s138
    $region4: #{tpu_custom_call.1} parent=1 // loop_header_branch
      %17 = sbr.rel (%p15) target = $region8
    $region5: #{tpu_custom_call.1} parent=1 // loop_body
      %s19 = ssub.s32 %s14, 1
      %s20 = ssub.s32 %s14, 2
      %s21 = sadd.s32 %s14, 1
      %s22 = ssub.s32 %s14, %s21
      %p23 = scmp.eq.s32.totalorder %s22, 0
      %s25 = sadd.s32 %s24, 1
      %s26 = scalar_select %p23, %s24, %s25
      %p29 = pneg %p23
      %p30 = scmp.eq.s32.totalorder %s14, 1
      %p31 = por %p29, %p30
      %p32 = scmp.ne.s32.totalorder %s24, %s27
      %p33 = scmp.eq.s32.totalorder %s14, 0
      %p34 = por %p32, %p33
      %p35 = scmp.ne.s32.totalorder %s24, %s27
      %p36 = scmp.eq.s32.totalorder %s19, 1
      %p37 = por %p35, %p36
      %p38 = scmp.ne.s32.totalorder %s27, %s28
      %p39 = scmp.eq.s32.totalorder %s19, 0
      %p40 = por %p38, %p39
      %p41 = scmp.ne.s32.totalorder %s27, %s28
      %p42 = scmp.eq.s32.totalorder %s20, 1
      %p43 = por %p41, %p42
      %p45 = scmp.ne.s32.totalorder %s28, %s44
      %p46 = scmp.eq.s32.totalorder %s20, 0
      %p47 = por %p45, %p46
      %s49 = sadd.s32 %s48, 1
      %p52 = scmp.eq.s32.totalorder %s14, 1
      %p53 = scmp.ne.s32.totalorder %s48, %s50
      %p54 = scmp.eq.s32.totalorder %s14, 0
      %p55 = por %p53, %p54
      %p56 = scmp.ne.s32.totalorder %s48, %s50
      %p57 = scmp.eq.s32.totalorder %s19, 1
      %p58 = por %p56, %p57
      %p59 = scmp.ne.s32.totalorder %s50, %s51
      %p60 = scmp.eq.s32.totalorder %s19, 0
      %p61 = por %p59, %p60
      %p62 = scmp.ne.s32.totalorder %s50, %s51
      %p63 = scmp.eq.s32.totalorder %s20, 1
      %p64 = por %p62, %p63
      %p66 = scmp.ne.s32.totalorder %s51, %s65
      %p67 = scmp.eq.s32.totalorder %s20, 0
      %p68 = por %p66, %p67
      %s70 = sadd.s32 %s69, 1
      %p73 = scmp.eq.s32.totalorder %s14, 1
      %p74 = scmp.ne.s32.totalorder %s69, %s71
      %p75 = scmp.eq.s32.totalorder %s14, 0
      %p76 = por %p74, %p75
      %p77 = scmp.ne.s32.totalorder %s69, %s71
      %p78 = scmp.eq.s32.totalorder %s19, 1
      %p79 = por %p77, %p78
      %p80 = scmp.ne.s32.totalorder %s71, %s72
      %p81 = scmp.eq.s32.totalorder %s19, 0
      %p82 = por %p80, %p81
      %p83 = scmp.ne.s32.totalorder %s71, %s72
      %p84 = scmp.eq.s32.totalorder %s20, 1
      %p85 = por %p83, %p84
      %p87 = scmp.ne.s32.totalorder %s72, %s86
      %p88 = scmp.eq.s32.totalorder %s20, 0
      %p89 = por %p87, %p88
      %s91 = sadd.s32 %s90, 1
      %p94 = scmp.eq.s32.totalorder %s14, 1
      %p95 = scmp.ne.s32.totalorder %s90, %s92
      %p96 = scmp.eq.s32.totalorder %s14, 0
      %p97 = por %p95, %p96
      %p98 = scmp.ne.s32.totalorder %s90, %s92
      %p99 = scmp.eq.s32.totalorder %s19, 1
      %p100 = por %p98, %p99
      %p101 = scmp.ne.s32.totalorder %s92, %s93
      %p102 = scmp.eq.s32.totalorder %s19, 0
      %p103 = por %p101, %p102
      %p104 = scmp.ne.s32.totalorder %s92, %s93
      %p105 = scmp.eq.s32.totalorder %s20, 1
      %p106 = por %p104, %p105
      %p108 = scmp.ne.s32.totalorder %s93, %s107
      %p109 = scmp.eq.s32.totalorder %s20, 0
      %p110 = por %p108, %p109
      %s112 = sadd.s32 %s111, 1
      %p115 = scmp.eq.s32.totalorder %s14, 1
      %p116 = scmp.ne.s32.totalorder %s111, %s113
      %p117 = scmp.eq.s32.totalorder %s14, 0
      %p118 = por %p116, %p117
      %p119 = scmp.ne.s32.totalorder %s111, %s113
      %p120 = scmp.eq.s32.totalorder %s19, 1
      %p121 = por %p119, %p120
      %p122 = scmp.ne.s32.totalorder %s113, %s114
      %p123 = scmp.eq.s32.totalorder %s19, 0
      %p124 = por %p122, %p123
      %p125 = scmp.ne.s32.totalorder %s113, %s114
      %p126 = scmp.eq.s32.totalorder %s20, 1
      %p127 = por %p125, %p126
      %p129 = scmp.ne.s32.totalorder %s114, %s128
      %p130 = scmp.eq.s32.totalorder %s20, 0
      %p131 = por %p129, %p130
      %s132 = ssub.s32 %s14, %s21
      %p133 = scmp.eq.s32.totalorder %s132, 0
      %s135 = sadd.s32 %s134, 1
      %s136 = scalar_select %p133, %s134, %s135
      %p139 = pneg %p133
      %p140 = scmp.eq.s32.totalorder %s14, 1
      %p141 = por %p139, %p140
      %p142 = scmp.ne.s32.totalorder %s134, %s137
      %p143 = scmp.eq.s32.totalorder %s14, 0
      %p144 = por %p142, %p143
      %p145 = scmp.ne.s32.totalorder %s134, %s137
      %p146 = scmp.eq.s32.totalorder %s19, 1
      %p147 = por %p145, %p146
      %p148 = scmp.ne.s32.totalorder %s137, %s138
      %p149 = scmp.eq.s32.totalorder %s19, 0
      %p150 = por %p148, %p149
      %p151 = scmp.ne.s32.totalorder %s137, %s138
      %p152 = scmp.eq.s32.totalorder %s20, 1
      %p153 = por %p151, %p152
      %p155 = scmp.ne.s32.totalorder %s138, %s154
      %p156 = scmp.eq.s32.totalorder %s20, 0
      %p157 = por %p155, %p156
      %p158 = scmp.le.s32.totalorder 1, %s14
      %p159 = scmp.lt.s32.totalorder %s14, 3
      %p160 = pnand %p158, %p159
      %p161 = pneg %p160
      // Predicated region
      $region9: #{tpu_custom_call.1} parent=5 // pred_check
        _
      $region10: #{tpu_custom_call.1} parent=5 // pred_check_branch
        %163 = sbr.rel (%p160) target = $region12
      $region11: #{tpu_custom_call.1} parent=5 // pred_region
        %s164 = ssub.s32 %s14, 1
        // Predicated region
        $region13: #{tpu_custom_call.1} parent=11 // pred_check
          %p165 = pneg %p61
        $region14: #{tpu_custom_call.1} parent=11 // pred_check_branch
          %167 = sbr.rel (%p165) target = $region16
        $region15: #{tpu_custom_call.1} parent=11 // pred_region
          _
        $region16: #{tpu_custom_call.1} parent=11 // pred_fallthru
          _
        // Predicated region
        $region17: #{tpu_custom_call.1} parent=11 // pred_check
          %p168 = pneg %p82
        $region18: #{tpu_custom_call.1} parent=11 // pred_check_branch
          %170 = sbr.rel (%p168) target = $region20
        $region19: #{tpu_custom_call.1} parent=11 // pred_region
          _
        $region20: #{tpu_custom_call.1} parent=11 // pred_fallthru
          _
        // Predicated region
        $region21: #{tpu_custom_call.1} parent=11 // pred_check
          %p171 = pneg %p103
        $region22: #{tpu_custom_call.1} parent=11 // pred_check_branch
          %173 = sbr.rel (%p171) target = $region24
        $region23: #{tpu_custom_call.1} parent=11 // pred_region
          _
        $region24: #{tpu_custom_call.1} parent=11 // pred_fallthru
          _
        // Predicated region
        $region25: #{tpu_custom_call.1} parent=11 // pred_check
          %p174 = pneg %p124
        $region26: #{tpu_custom_call.1} parent=11 // pred_check_branch
          %176 = sbr.rel (%p174) target = $region28
        $region27: #{tpu_custom_call.1} parent=11 // pred_region
          _
        $region28: #{tpu_custom_call.1} parent=11 // pred_fallthru
          _
      $region12: #{tpu_custom_call.1} parent=5 // pred_fallthru
        _
      %p177 = scmp.lt.s32.totalorder %s14, 2
      // Predicated region
      $region29: #{tpu_custom_call.1} parent=5 // pred_check
        %p178 = pneg %p177
      $region30: #{tpu_custom_call.1} parent=5 // pred_check_branch
        %180 = sbr.rel (%p178) target = $region32
      $region31: #{tpu_custom_call.1} parent=5 // pred_region
        // Predicated region
        $region33: #{tpu_custom_call.1} parent=31 // pred_check
          %p181 = pneg %p34
        $region34: #{tpu_custom_call.1} parent=31 // pred_check_branch
          %183 = sbr.rel (%p181) target = $region36
        $region35: #{tpu_custom_call.1} parent=31 // pred_region
          %p184 = scmp.lt.s32.totalorder %s14, 1
          %s185 = scalar_select %p184, %s14, 1
          %s186 = smul.addr %s185, 8
          %s187 = scalar_lea.vmem %s0, %s186
        $region36: #{tpu_custom_call.1} parent=31 // pred_fallthru
          _
      $region32: #{tpu_custom_call.1} parent=5 // pred_fallthru
        _
      %p188 = scmp.le.s32.totalorder 1, %s14
      %p189 = scmp.lt.s32.totalorder %s14, 3
      %p190 = pnand %p188, %p189
      %p191 = pneg %p190
      // Predicated region
      $region37: #{tpu_custom_call.1} parent=5 // pred_check
        _
      $region38: #{tpu_custom_call.1} parent=5 // pred_check_branch
        %193 = sbr.rel (%p190) target = $region40
      $region39: #{tpu_custom_call.1} parent=5 // pred_region
        %s194 = ssub.s32 %s14, 1
        %p195 = scmp.lt.s32.totalorder %s19, 1
        %s196 = scalar_select %p195, %s19, 1
        %s197 = smul.addr %s196, 8
        %s198 = scalar_lea.vmem %s0, %s197
        %p199 = pneg %p40
        %p200 = pneg %p37
        %p201 = pneg %p61
        %p202 = pneg %p58
        %p203 = pneg %p82
        %p204 = pneg %p79
        %p205 = pneg %p103
        %p206 = pneg %p100
        %p207 = pneg %p124
        %p208 = pneg %p121
        %p209 = pneg %p150
        %p210 = pneg %p147
        %s211 = sand.u32 %s137, 1
        %s212 = scalar_lea.sflag [#allocation4], %s211
        %s213 = sand.u32 %s137, 1
        %s214 = smul.addr %s213, 8
        %s215 = scalar_lea.vmem [#allocation3], %s214
        %p216 = scmp.lt.s32.totalorder %s19, 1
        %s217 = scalar_select %p216, %s19, 1
        %s218 = smul.addr %s217, 8
        %s219 = scalar_lea.vmem %s0, %s218
        %v221 = vld [vmem:[%s219] sm:$0xff]
        %v222 = vpack.c.bf16 %v221, %v221
        %vm223 = vcmask 261120
        %224 = vst.msk [vmem:[#allocation2] sm:$0xff] %vm223, 0.0
        %v225 = vld [vmem:[%s1] sm:$0xf]
        %v226 = vld [vmem:[%s1 + $0x4] sm:$0xf]
        %v227 = vld [vmem:[%s1 + $0x8] sm:$0xf]
        %v228 = vld [vmem:[%s1 + $0xc] sm:$0xf]
        %v229 = vld [vmem:[%s2] sm:$0x1]
        %v230 = vld [vmem:[%s3] sm:$0xf]
        %v231 = vld [vmem:[%s3 + $0x4] sm:$0xf]
        %v232 = vld [vmem:[%s3 + $0x8] sm:$0xf]
        %v233 = vld [vmem:[%s3 + $0xc] sm:$0xf]
        %v234 = vld [vmem:[%s3 + $0x10] sm:$0xf]
        %v235 = vld [vmem:[%s3 + $0x14] sm:$0xf]
        %v236 = vld [vmem:[%s3 + $0x18] sm:$0xf]
        %v237 = vld [vmem:[%s3 + $0x1c] sm:$0xf]
        %v239 = vlaneseq
        %v240 = vshrl.u32 %v239, 7
        %v241 = vsub.s32 0, %v240
        %v242 = vrot.slane %v229, %v241
        %v248 = vunpack.c.l.b16 %v225
        %v249 = vunpack.c.l.b16 %v226
        %v250 = vunpack.c.l.b16 %v227
        %v251 = vunpack.c.l.b16 %v228
        %v252 = vpack.c.b16 %v249, %v248
        %v253 = vpack.c.b16 %v251, %v250
        %v257 = vsel %vm223, %v222, 0
        %259 = vmatprep.subr.bf16.mxu0 0
        %260 = vmatpush1.bf16.msra.mxu0 0
        %261 = vmatprep.subr.bf16.mxu0 0
        %262 = vmatpush1.bf16.msra.mxu0 0
        %263 = vmatprep.subr.bf16.mxu0 0
        %264 = vmatpush1.bf16.msra.mxu0 0
        %265 = vmatprep.subr.bf16.mxu0 0
        %266 = vmatpush1.bf16.msra.mxu0 0
        %267 = vmatprep.subr.bf16.mxu0 0
        %268 = vmatpush1.bf16.msra.mxu0 0
        %269 = vmatprep.subr.bf16.mxu0 0
        %270 = vmatpush1.bf16.msra.mxu0 0
        %271 = vmatprep.subr.bf16.mxu0 0
        %272 = vmatpush1.bf16.msra.mxu0 %v253
        %273 = vmatprep.subr.bf16.mxu0 0
        %274 = vmatpush1.bf16.msra.mxu0 %v252
        %275 = vmatprep.subr.bf16.mxu0 0
        %276 = vmatpush2.bf16.msra.mxu0 0
        %277 = vmatprep.subr.bf16.mxu0 0
        %278 = vmatpush2.bf16.msra.mxu0 0
        %279 = vmatprep.subr.bf16.mxu0 0
        %280 = vmatpush2.bf16.msra.mxu0 0
        %281 = vmatprep.subr.bf16.mxu0 0
        %282 = vmatpush2.bf16.msra.mxu0 0
        %283 = vmatprep.subr.bf16.mxu0 0
        %284 = vmatpush2.bf16.msra.mxu0 0
        %285 = vmatprep.subr.bf16.mxu0 0
        %286 = vmatpush2.bf16.msra.mxu0 0
        %287 = vmatprep.subr.bf16.mxu0 0
        %288 = vmatpush2.bf16.msra.mxu0 0
        %289 = vmatprep.subr.bf16.mxu0 0
        %290 = vmatpush2.bf16.msra.mxu0 0
        %291 = vmatprep.mubr.bf16.mxu0 0
        %292 = vmatmul.mubr.bf16.gmra.mxu0 %v257
        %v293 = vpop.f32.mrf.mxu0
        %v294 = vadd.f32 %v242, %v293
        %v295 = vpop.f32.mrf.mxu0
        %v296 = vpop.f32.mrf.mxu0
        %v297 = vpop.f32.mrf.mxu0
        %298 = vdwg.mxu0
        %v299 = vmul.f32 %v294, 0.5
        %v300 = vmul.f32 %v294, 0.70710677
        %v301 = vand.u32 2147483647, %v300
        %v302 = vmul.f32 %v301, 0.3275911
        %v303 = vadd.f32 %v302, 1.0
        %v304 = vrcp.pop %v303
        %v305 = vmul.f32 %v304, 1.0614054
        %v306 = vadd.f32 %v305, -1.4531521
        %v307 = vmul.f32 %v306, %v304
        %v308 = vadd.f32 %v307, 1.4214138
        %v309 = vmul.f32 %v308, %v304
        %v310 = vadd.f32 %v309, -0.28449672
        %v311 = vmul.f32 %v310, %v304
        %v312 = vadd.f32 %v311, 0.2548296
        %v313 = vmul.f32 %v312, %v304
        %v314 = vsub.f32 0.0, %v301
        %v315 = vmul.f32 %v314, %v301
        %v316 = vmul.f32 %v315, 1.442695
        %v317 = vpow.pop %v316
        %v318 = vmul.f32 %v313, %v317
        %v319 = vsub.f32 1.0, %v318
        %vm320 = vcmp.lt.f32.partialorder %v300, 0.0
        %v321 = vsub.f32 0.0, %v319
        %v322 = vsel %vm320, %v321, %v319
        %v323 = vadd.f32 %v322, 1.0
        %v324 = vmul.f32 %v299, %v323
        %v325 = vld [vmem:[#allocation2] sm:$0xff]
        %v326 = vpack.c.bf16 %v324, %v324
        %v335 = vunpack.c.l.b16 %v230
        %v336 = vunpack.c.l.b16 %v231
        %v337 = vunpack.c.l.b16 %v232
        %v338 = vunpack.c.l.b16 %v233
        %v339 = vunpack.c.l.b16 %v234
        %v340 = vunpack.c.l.b16 %v235
        %v341 = vunpack.c.l.b16 %v236
        %v342 = vunpack.c.l.b16 %v237
        %v343 = vpack.c.b16 %v336, %v335
        %v344 = vpack.c.b16 %v338, %v337
        %v345 = vpack.c.b16 %v340, %v339
        %v346 = vpack.c.b16 %v342, %v341
        %vm351 = vcmask 523264
        %v353 = vsel %vm351, %v326, 0
        %355 = vmatprep.subr.bf16.mxu0 0
        %356 = vmatpush1.bf16.msra.mxu0 0
        %357 = vmatprep.subr.bf16.mxu0 0
        %358 = vmatpush1.bf16.msra.mxu0 0
        %359 = vmatprep.subr.bf16.mxu0 0
        %360 = vmatpush1.bf16.msra.mxu0 0
        %361 = vmatprep.subr.bf16.mxu0 0
        %362 = vmatpush1.bf16.msra.mxu0 0
        %363 = vmatprep.subr.bf16.mxu0 0
        %364 = vmatpush1.bf16.msra.mxu0 %v346
        %365 = vmatprep.subr.bf16.mxu0 0
        %366 = vmatpush1.bf16.msra.mxu0 %v345
        %367 = vmatprep.subr.bf16.mxu0 0
        %368 = vmatpush1.bf16.msra.mxu0 %v344
        %369 = vmatprep.subr.bf16.mxu0 0
        %370 = vmatpush1.bf16.msra.mxu0 %v343
        %371 = vmatprep.subr.bf16.mxu0 0
        %372 = vmatpush2.bf16.msra.mxu0 0
        %373 = vmatprep.subr.bf16.mxu0 0
        %374 = vmatpush2.bf16.msra.mxu0 0
        %375 = vmatprep.subr.bf16.mxu0 0
        %376 = vmatpush2.bf16.msra.mxu0 0
        %377 = vmatprep.subr.bf16.mxu0 0
        %378 = vmatpush2.bf16.msra.mxu0 0
        %379 = vmatprep.subr.bf16.mxu0 0
        %380 = vmatpush2.bf16.msra.mxu0 0
        %381 = vmatprep.subr.bf16.mxu0 0
        %382 = vmatpush2.bf16.msra.mxu0 0
        %383 = vmatprep.subr.bf16.mxu0 0
        %384 = vmatpush2.bf16.msra.mxu0 0
        %385 = vmatprep.subr.bf16.mxu0 0
        %386 = vmatpush2.bf16.msra.mxu0 0
        %387 = vmatprep.mubr.bf16.mxu0 0
        %388 = vmatmul.mubr.bf16.gmra.mxu0 %v353
        %v389 = vpop.f32.mrf.mxu0
        %v390 = vadd.f32 0.0, %v389
        %v391 = vpop.f32.mrf.mxu0
        %v392 = vpop.f32.mrf.mxu0
        %v393 = vpop.f32.mrf.mxu0
        %394 = vdwg.mxu0
        %v395 = vadd.f32 %v325, %v390
        %396 = vst.msk [vmem:[#allocation2] sm:$0xff] %vm223, %v395
        %v397 = vld [vmem:[#allocation2] sm:$0xff]
        %v398 = vld [vmem:[%s4] sm:$0x1]
        %v400 = vlaneseq
        %v401 = vshrl.u32 %v400, 7
        %v402 = vsub.s32 0, %v401
        %v403 = vrot.slane %v398, %v402
        %v405 = vadd.f32 %v397, %v403
        %406 = vst.msk [vmem:[%s215] sm:$0xff] %vm223, %v405
        %s407 = sand.u32 %s137, 1
        %s408 = scalar_lea.sflag [#allocation4], %s407
        %s409 = sand.u32 %s137, 1
        %s410 = smul.addr %s409, 8
        %s411 = scalar_lea.vmem [#allocation3], %s410
        // Predicated region
        $region41: #{tpu_custom_call.1} parent=39 // pred_check
          %p412 = pneg %p147
        $region42: #{tpu_custom_call.1} parent=39 // pred_check_branch
          %414 = sbr.rel (%p412) target = $region44
        $region43: #{tpu_custom_call.1} parent=39 // pred_region
          %s416 = ssub.s32 128, 128
          %417 = vsyncadd %s408, %s416
          %s418 = smul.addr %s19, 128
          %s419 = scalar_lea.hbm %s5, %s418
          %s421 = sshll.u32 %s411, 4
          %s422 = int_to_ptr.vmem [resolvable:$true] %s421
          %424 = dma.vmem_to_hbm [thread:$0]  %s422, 128, %s419, %s408
        $region44: #{tpu_custom_call.1} parent=39 // pred_fallthru
          _
      $region40: #{tpu_custom_call.1} parent=5 // pred_fallthru
        _
      %p425 = scmp.le.s32.totalorder 2, %s14
      // Predicated region
      $region45: #{tpu_custom_call.1} parent=5 // pred_check
        %p426 = pneg %p425
      $region46: #{tpu_custom_call.1} parent=5 // pred_check_branch
        %428 = sbr.rel (%p426) target = $region48
      $region47: #{tpu_custom_call.1} parent=5 // pred_region
        %s429 = ssub.s32 %s14, 2
        // Predicated region
        $region49: #{tpu_custom_call.1} parent=47 // pred_check
          %p430 = pneg %p153
        $region50: #{tpu_custom_call.1} parent=47 // pred_check_branch
          %432 = sbr.rel (%p430) target = $region52
        $region51: #{tpu_custom_call.1} parent=47 // pred_region
          %s433 = sand.u32 %s138, 1
          %s434 = scalar_lea.sflag [#allocation4], %s433
          %s435 = sand.u32 %s138, 1
          %s436 = smul.addr %s435, 8
          %s437 = scalar_lea.vmem [#allocation3], %s436
          %438 = dma.done %s434, 128
        $region52: #{tpu_custom_call.1} parent=47 // pred_fallthru
          _
      $region48: #{tpu_custom_call.1} parent=5 // pred_fallthru
        _
    $region6: #{tpu_custom_call.1} parent=1 // loop_footer
      %s18 = sadd.s32 1, %s14
    $region7: #{tpu_custom_call.1} parent=1 // loop_footer_branch
      %13 = sbr.rel target = $region3
    $region8: #{tpu_custom_call.1} parent=1 // loop_exit
      _
    %439 = vsyncpa [#allocation4], 1
    %s440 = scalar_lea.sflag [#allocation4], 1
    %441 = vsyncpa %s440, 1

</llo_original>
